<compile_context>
chip_gen: v6e
topology: v6e:2x2x1
jax: 0.10.0
libtpu: 0.0.40
codegen_flags: <defaults>
</compile_context>

<pallas_src>
import math
import functools

import jax
import jax.numpy as jnp
import numpy as np
from jax.experimental import pallas as pl
from jax.experimental.pallas import tpu as pltpu


def _round_up(a, b):
    return (a + b - 1) // b * b


def _ssge_kernel(x_aug_ref, s_dist_ref, s_w_ref, x_out_ref, out_ref, acc_ref, *, d):
    """One (TN x TM) tile step; M (axis 1 of the grid) is the reduction axis."""
    k = pl.program_id(1)

    @pl.when(k == 0)
    def _():
        acc_ref[...] = jnp.zeros_like(acc_ref)

    # RBF exponent via a single lane-contracting matmul of augmented operands:
    #   e[n,m] = x.s/l^2 - 0.5*|x|^2/l^2 - 0.5*|s|^2/l^2 = -0.5*|x-s|^2/l^2
    e = jax.lax.dot_general(
        x_aug_ref[...], s_dist_ref[...],
        dimension_numbers=(((1,), (1,)), ((), ())),
        preferred_element_type=jnp.float32)                       # (TN, TM)
    kmat = jnp.exp(e)                                             # EUP

    # One MXU matmul yields both t' (cols :d) and rowsum' (col d):
    #   s_w = [w'*s | w' | 0-pad],  w' = -(sqrt(M)/l^2)*w  (folded in wrapper)
    acc_ref[...] += jnp.dot(kmat, s_w_ref[...],
                            preferred_element_type=jnp.float32)   # (TN, DW)

    @pl.when(k == pl.num_programs(1) - 1)
    def _():
        acc = acc_ref[...]
        rowsum = acc[:, d:d + 1]                                  # sum_m w' K
        out_ref[...] = (x_out_ref[...] * rowsum - acc).astype(out_ref.dtype)


def ssge_forward(x, sample, eigvec, eigval, beta, lengthscale):
    """Pallas SSGE gradient estimate. x:(N,D) -> (N,D)."""
    N, D = x.shape
    M, J = eigvec.shape
    f32 = jnp.float32
    inv_l2 = 1.0 / (float(lengthscale) * float(lengthscale))
    sqrt_m = math.sqrt(M)

    xf = x.astype(f32)
    sf = sample.astype(f32)

    # ---- tiny precompute outside the kernel (O(M*J) flops, O(M) data) ----
    coef = jnp.sum(beta.astype(f32), axis=0) / eigval.astype(f32).reshape(-1)   # (J,)
    w = eigvec.astype(f32) @ coef                                               # (M,)
    w = (-(sqrt_m * inv_l2)) * w                                                # fold scalar

    # ---- lane-dense augmented operands ----
    DA = _round_up(D + 2, 128)          # distance-matmul contraction width
    DW = _round_up(D + 1, 128)          # output / weighted-sample width
    TN = min(256, _round_up(N, 8))      # N tile (rows of the output)
    TM = min(1024, _round_up(M, 8))     # M tile (reduction axis)
    N_pad = _round_up(N, TN)
    M_pad = _round_up(M, TM)

    x2 = jnp.sum(xf * xf, axis=-1, keepdims=True)                               # (N,1)
    s2 = jnp.sum(sf * sf, axis=-1, keepdims=True)                               # (M,1)
    ones_n = jnp.ones((N, 1), f32)
    ones_m = jnp.ones((M, 1), f32)

    x_aug = jnp.concatenate([xf, -0.5 * inv_l2 * x2, ones_n], axis=1)           # (N, D+2)
    s_dist = jnp.concatenate([inv_l2 * sf, ones_m, -0.5 * inv_l2 * s2], axis=1) # (M, D+2)
    s_w = jnp.concatenate([w[:, None] * sf, w[:, None]], axis=1)                # (M, D+1)
    x_out = xf                                                                  # (N, D)

    # Zero padding: padded sample rows contribute 0 (s_w rows are 0); padded x
    # rows produce finite garbage that is sliced off below.
    x_aug = jnp.pad(x_aug, ((0, N_pad - N), (0, DA - (D + 2))))
    s_dist = jnp.pad(s_dist, ((0, M_pad - M), (0, DA - (D + 2))))
    s_w = jnp.pad(s_w, ((0, M_pad - M), (0, DW - (D + 1))))
    x_out = jnp.pad(x_out, ((0, N_pad - N), (0, DW - D)))

    grid = (N_pad // TN, M_pad // TM)
    kernel = functools.partial(_ssge_kernel, d=D)

    out_pad = pl.pallas_call(
        kernel,
        out_shape=jax.ShapeDtypeStruct((N_pad, DW), x.dtype),
        grid=grid,
        in_specs=[
            pl.BlockSpec((TN, DA), lambda i, k: (i, 0)),   # x_aug   (resident over k)
            pl.BlockSpec((TM, DA), lambda i, k: (k, 0)),   # s_dist  (streamed over k)
            pl.BlockSpec((TM, DW), lambda i, k: (k, 0)),   # s_w     (streamed over k)
            pl.BlockSpec((TN, DW), lambda i, k: (i, 0)),   # x_out   (resident over k)
        ],
        out_specs=pl.BlockSpec((TN, DW), lambda i, k: (i, 0)),
        scratch_shapes=[pltpu.VMEM((TN, DW), jnp.float32)],
        compiler_params=pltpu.CompilerParams(
            dimension_semantics=("parallel", "arbitrary"),
            # Tiles use ~4 MiB double-buffered; 48 MiB stays under the 64 MiB
            # physical VMEM of a v7x TensorCore and is trivial on v5e/v6e.
            vmem_limit_bytes=48 << 20),
    )(x_aug, s_dist, s_w, x_out)

    return out_pad[:N, :D]


def _reference_forward(x, sample, eigvec, eigval, beta, lengthscale):
    """Pure-JAX reference mirroring the torch forward + autograd.grad."""
    M = sample.shape[0]

    def scalar_fn(xx):
        d2 = jnp.sum((xx[:, None, :] - sample[None, :, :]) ** 2, axis=-1)
        K_wing = jnp.exp(-0.5 * d2 / (lengthscale ** 2))          # (N, M)
        eigfun_hat = math.sqrt(M) * (K_wing @ eigvec) / eigval    # (N, J)
        gradfun_hat = eigfun_hat @ beta.T                         # (N, M)
        return jnp.sum(gradfun_hat)

    return jax.grad(scalar_fn)(x)


if __name__ == "__main__":
    key = jax.random.PRNGKey(0)

    def run_case(N, D, M, J):
        kx, ks, kv, ke, kb = jax.random.split(jax.random.fold_in(key, N * 7919 + M), 5)
        lengthscale = math.sqrt(D)   # keeps the RBF kernel numerically meaningful

        x = jax.random.normal(kx, (N, D), dtype=jnp.float32)
        sample = jax.random.normal(ks, (M, D), dtype=jnp.float32)
        eigvec = jax.random.normal(kv, (M, J), dtype=jnp.float32) / math.sqrt(M)
        eigval = jnp.abs(jax.random.normal(ke, (J,), dtype=jnp.float32)) + 0.5
        beta = jax.random.normal(kb, (M, J), dtype=jnp.float32) * 0.1

        out = jax.block_until_ready(
            ssge_forward(x, sample, eigvec, eigval, beta, lengthscale))
        ref = _reference_forward(x, sample, eigvec, eigval, beta, lengthscale)
        # Tolerance covers MXU multi-pass f32 behaviour across TPU generations.
        np.testing.assert_allclose(np.asarray(out), np.asarray(ref),
                                   rtol=1e-2, atol=1e-2)

    run_case(N=16, D=32, M=64, J=8)       # single-tile smoke test
    run_case(N=272, D=32, M=1152, J=16)   # multi-tile grid + row padding path

    print("KERNEL_OK")
</pallas_src>

<mosaic_0001>
module attributes {stable_mosaic.version = 11 : i64} {
  func.func @_ssge_kernel(%arg0: i32, %arg1: i32, %arg2: memref<16x128xf32, #tpu.memory_space<vmem>>, %arg3: memref<64x128xf32, #tpu.memory_space<vmem>>, %arg4: memref<64x128xf32, #tpu.memory_space<vmem>>, %arg5: memref<16x128xf32, #tpu.memory_space<vmem>>, %arg6: memref<16x128xf32, #tpu.memory_space<vmem>>, %arg7: memref<16x128xf32, #tpu.memory_space<vmem>>) attributes {dimension_semantics = [#tpu.dimension_semantics<parallel>, #tpu.dimension_semantics<arbitrary>], iteration_bounds = array<i64: 1, 1>, scalar_prefetch = 0 : i64, scratch_operands = 1 : i64, tpu.core_type = #tpu.core_type<tc>, window_params = [{transform_indices = @transform_0, window_bounds = array<i64: 16, 128>}, {transform_indices = @transform_1, window_bounds = array<i64: 64, 128>}, {transform_indices = @transform_2, window_bounds = array<i64: 64, 128>}, {transform_indices = @transform_3, window_bounds = array<i64: 16, 128>}, {transform_indices = @transform_4, window_bounds = array<i64: 16, 128>}]} {
    %c0_i32 = arith.constant 0 : i32
    %0 = arith.cmpi eq, %arg1, %c0_i32 : i32
    %1 = arith.extui %0 : i1 to i32
    %c0_i32_0 = arith.constant 0 : i32
    %2 = arith.cmpi ne, %1, %c0_i32_0 : i32
    scf.if %2 {
      %cst_13 = arith.constant 0.000000e+00 : f32
      %15 = vector.broadcast %cst_13 : f32 to vector<16x128xf32>
      %c0_14 = arith.constant 0 : index
      %c0_15 = arith.constant 0 : index
      %16 = vector.load %arg7[%c0_14, %c0_15] : memref<16x128xf32, #tpu.memory_space<vmem>>, vector<16x128xf32>
      tpu.vector_store %arg7[%c0_14, %c0_15], %15 {strides = array<i32>} : memref<16x128xf32, #tpu.memory_space<vmem>>, vector<16x128xf32>,
    } else {
    }
    %c0 = arith.constant 0 : index
    %c0_1 = arith.constant 0 : index
    %3 = vector.load %arg2[%c0, %c0_1] : memref<16x128xf32, #tpu.memory_space<vmem>>, vector<16x128xf32>
    %c0_2 = arith.constant 0 : index
    %c0_3 = arith.constant 0 : index
    %4 = vector.load %arg3[%c0_2, %c0_3] : memref<64x128xf32, #tpu.memory_space<vmem>>, vector<64x128xf32>
    %cst = arith.constant dense<0.000000e+00> : vector<16x64xf32>
    %5 = tpu.matmul %3, %4, %cst {dimension_numbers = #tpu.dot_dimension_numbers<[1], [1], [0], [0], [0, 0, 1, 0], [], []>} : vector<16x128xf32>, vector<64x128xf32>, vector<16x64xf32> -> vector<16x64xf32>
    %6 = math.exp %5 : vector<16x64xf32>
    %c0_4 = arith.constant 0 : index
    %c0_5 = arith.constant 0 : index
    %7 = vector.load %arg7[%c0_4, %c0_5] : memref<16x128xf32, #tpu.memory_space<vmem>>, vector<16x128xf32>
    %c0_6 = arith.constant 0 : index
    %c0_7 = arith.constant 0 : index
    %8 = vector.load %arg4[%c0_6, %c0_7] : memref<64x128xf32, #tpu.memory_space<vmem>>, vector<64x128xf32>
    %cst_8 = arith.constant dense<0.000000e+00> : vector<16x128xf32>
    %9 = tpu.matmul %6, %8, %cst_8 {dimension_numbers = #tpu.dot_dimension_numbers<[1], [0], [0], [1], [0, 0, 1, 1], [], []>} : vector<16x64xf32>, vector<64x128xf32>, vector<16x128xf32> -> vector<16x128xf32>
    %10 = arith.addf %7, %9 : vector<16x128xf32>
    %c0_9 = arith.constant 0 : index
    %c0_10 = arith.constant 0 : index
    %11 = vector.load %arg7[%c0_9, %c0_10] : memref<16x128xf32, #tpu.memory_space<vmem>>, vector<16x128xf32>
    tpu.vector_store %arg7[%c0_9, %c0_10], %10 {strides = array<i32>} : memref<16x128xf32, #tpu.memory_space<vmem>>, vector<16x128xf32>,
    %c0_i32_11 = arith.constant 0 : i32
    %12 = arith.cmpi eq, %arg1, %c0_i32_11 : i32
    %13 = arith.extui %12 : i1 to i32
    %c0_i32_12 = arith.constant 0 : i32
    %14 = arith.cmpi ne, %13, %c0_i32_12 : i32
    scf.if %14 {
      %c0_13 = arith.constant 0 : index
      %c0_14 = arith.constant 0 : index
      %15 = vector.load %arg7[%c0_13, %c0_14] : memref<16x128xf32, #tpu.memory_space<vmem>>, vector<16x128xf32>
      %16 = vector.extract_strided_slice %15 {offsets = [0, 32], sizes = [16, 1], strides = [1, 1]} : vector<16x128xf32> to vector<16x1xf32>
      %c0_15 = arith.constant 0 : index
      %c0_16 = arith.constant 0 : index
      %17 = vector.load %arg5[%c0_15, %c0_16] : memref<16x128xf32, #tpu.memory_space<vmem>>, vector<16x128xf32>
      %18 = vector.broadcast %16 : vector<16x1xf32> to vector<16x128xf32>
      %19 = arith.mulf %17, %18 : vector<16x128xf32>
      %20 = arith.subf %19, %15 : vector<16x128xf32>
      %c0_17 = arith.constant 0 : index
      %c0_18 = arith.constant 0 : index
      %21 = vector.load %arg6[%c0_17, %c0_18] : memref<16x128xf32, #tpu.memory_space<vmem>>, vector<16x128xf32>
      tpu.vector_store %arg6[%c0_17, %c0_18], %20 {strides = array<i32>} : memref<16x128xf32, #tpu.memory_space<vmem>>, vector<16x128xf32>,
    } else {
    }
    return
  }
  func.func @transform_0(%arg0: i32, %arg1: i32) -> (i32, i32) {
    %c0_i32 = arith.constant 0 : i32
    %c0_i32_0 = arith.constant 0 : i32
    return %arg0, %c0_i32 : i32, i32
  }
  func.func @transform_1(%arg0: i32, %arg1: i32) -> (i32, i32) {
    %c0_i32 = arith.constant 0 : i32
    %c0_i32_0 = arith.constant 0 : i32
    return %arg1, %c0_i32 : i32, i32
  }
  func.func @transform_2(%arg0: i32, %arg1: i32) -> (i32, i32) {
    %c0_i32 = arith.constant 0 : i32
    %c0_i32_0 = arith.constant 0 : i32
    return %arg1, %c0_i32 : i32, i32
  }
  func.func @transform_3(%arg0: i32, %arg1: i32) -> (i32, i32) {
    %c0_i32 = arith.constant 0 : i32
    %c0_i32_0 = arith.constant 0 : i32
    return %arg0, %c0_i32 : i32, i32
  }
  func.func @transform_4(%arg0: i32, %arg1: i32) -> (i32, i32) {
    %c0_i32 = arith.constant 0 : i32
    %c0_i32_0 = arith.constant 0 : i32
    return %arg0, %c0_i32 : i32, i32
  }
}

</mosaic_0001>

<llo_original>
// kernel: tpu_custom_call.1
$region0: #{tpu_custom_call.1}
  #allocation0 [shape = 'u32[]', space=smem, size = 0x4, offset = 0x4, fixed_abs, tag = 'smem constant byte address 0x4 - core index']
  #allocation1 [shape = 'u32[144,128]{1,0:T(1,128)}', space=vmem, size = 0x12000, scoped, tag = 'internal scratch']
  #allocation2 [shape = 'f32[16,128]{1,0:T(8,128)}', space=vmem, size = 0x2000, scoped, tag = 'scratch operand']
  %s0 = inlined_call_operand.hbm [shape: f32[16,128], index: 0, kind: input, shape index: {}]
  %s1 = inlined_call_operand.hbm [shape: f32[64,128], index: 1, kind: input, shape index: {}]
  %s2 = inlined_call_operand.hbm [shape: f32[64,128], index: 2, kind: input, shape index: {}]
  %s3 = inlined_call_operand.hbm [shape: f32[16,128], index: 3, kind: input, shape index: {}]
  %s4 = inlined_call_operand.hbm [shape: f32[16,128], index: 4, kind: output, shape index: {}]
  %s5 = sld [smem:[#allocation0]]
  $region50: #{tpu_custom_call.1} parent=0
    _
  %s7 = ssub.s32 1, %s5
  %s8 = scalar_select 0, %s7, %s5
  $region1: #{tpu_custom_call.1} parent=0
    #allocation3 [shape = 'u8[8192]{0}', space=vmem, size = 0x2000, scoped, tag = 'input window, operand 0, single buffered']
    #allocation4 [shape = 's32[1]{0}', space=sflag, size = 0x4, scoped, tag = 'scoped memory for tpu_custom_call.1']
    #allocation5 [shape = 's32[1]{0}', space=sflag, size = 0x4, scoped, tag = 'scoped memory for tpu_custom_call.1']
    #allocation6 [shape = 'u8[32768]{0}', space=vmem, size = 0x8000, scoped, tag = 'input window, operand 1, single buffered']
    #allocation7 [shape = 's32[1]{0}', space=sflag, size = 0x4, scoped, tag = 'scoped memory for tpu_custom_call.1']
    #allocation8 [shape = 'u8[32768]{0}', space=vmem, size = 0x8000, scoped, tag = 'input window, operand 2, single buffered']
    #allocation9 [shape = 'u8[8192]{0}', space=vmem, size = 0x2000, scoped, tag = 'input window, operand 3, single buffered']
    #allocation10 [shape = 's32[1]{0}', space=sflag, size = 0x4, scoped, tag = 'scoped memory for tpu_custom_call.1']
    #allocation11 [shape = 'u8[8192]{0}', space=vmem, size = 0x2000, scoped, tag = 'output window, operand 0, single buffered']
    %9 = vsyncpa [#allocation4], 0
    %10 = vsyncpa [#allocation7], 0
    %11 = vsyncpa [#allocation10], 0
    %12 = vsyncpa [#allocation5], 0
    // Predicated region
    $region2: #{tpu_custom_call.1} parent=1 // pred_check
      _
    $region3: #{tpu_custom_call.1} parent=1 // pred_check_branch
      %14 = sbr.rel (0) target = $region5
    $region4: #{tpu_custom_call.1} parent=1 // pred_region
      %s16 = ssub.s32 256, 256
      %17 = vsyncadd [#allocation4], %s16
      %s18 = sshll.u32 [#allocation3], 4
      %s19 = int_to_ptr.vmem [resolvable:$true] %s18
      %24 = dma.hbm_to_vmem [thread:$0]  %s0, 256, %s19, [#allocation4], 128, 128, 8
    $region5: #{tpu_custom_call.1} parent=1 // pred_fallthru
      _
    // Predicated region
    $region6: #{tpu_custom_call.1} parent=1 // pred_check
      _
    $region7: #{tpu_custom_call.1} parent=1 // pred_check_branch
      %26 = sbr.rel (0) target = $region9
    $region8: #{tpu_custom_call.1} parent=1 // pred_region
      %s28 = ssub.s32 1024, 1024
      %29 = vsyncadd [#allocation7], %s28
      %s30 = sshll.u32 [#allocation6], 4
      %s31 = int_to_ptr.vmem [resolvable:$true] %s30
      %36 = dma.hbm_to_vmem [thread:$0]  %s1, 1024, %s31, [#allocation7], 128, 128, 8
    $region9: #{tpu_custom_call.1} parent=1 // pred_fallthru
      _
    // Predicated region
    $region10: #{tpu_custom_call.1} parent=1 // pred_check
      _
    $region11: #{tpu_custom_call.1} parent=1 // pred_check_branch
      %38 = sbr.rel (0) target = $region13
    $region12: #{tpu_custom_call.1} parent=1 // pred_region
      %s40 = ssub.s32 1024, 1024
      %41 = vsyncadd [#allocation7], %s40
      %s42 = sshll.u32 [#allocation8], 4
      %s43 = int_to_ptr.vmem [resolvable:$true] %s42
      %48 = dma.hbm_to_vmem [thread:$0]  %s2, 1024, %s43, [#allocation7], 128, 128, 8
    $region13: #{tpu_custom_call.1} parent=1 // pred_fallthru
      _
    // Predicated region
    $region14: #{tpu_custom_call.1} parent=1 // pred_check
      _
    $region15: #{tpu_custom_call.1} parent=1 // pred_check_branch
      %50 = sbr.rel (0) target = $region17
    $region16: #{tpu_custom_call.1} parent=1 // pred_region
      %s52 = ssub.s32 256, 256
      %53 = vsyncadd [#allocation10], %s52
      %s54 = sshll.u32 [#allocation9], 4
      %s55 = int_to_ptr.vmem [resolvable:$true] %s54
      %60 = dma.hbm_to_vmem [thread:$0]  %s3, 256, %s55, [#allocation10], 128, 128, 8
    $region17: #{tpu_custom_call.1} parent=1 // pred_fallthru
      _
    // Predicated region
    $region18: #{tpu_custom_call.1} parent=1 // pred_check
      _
    $region19: #{tpu_custom_call.1} parent=1 // pred_check_branch
      %62 = sbr.rel (0) target = $region21
    $region20: #{tpu_custom_call.1} parent=1 // pred_region
      %63 = dma.done [#allocation4], 256
    $region21: #{tpu_custom_call.1} parent=1 // pred_fallthru
      _
    // Predicated region
    $region22: #{tpu_custom_call.1} parent=1 // pred_check
      _
    $region23: #{tpu_custom_call.1} parent=1 // pred_check_branch
      %65 = sbr.rel (0) target = $region25
    $region24: #{tpu_custom_call.1} parent=1 // pred_region
      %66 = dma.done [#allocation7], 1024
    $region25: #{tpu_custom_call.1} parent=1 // pred_fallthru
      _
    // Predicated region
    $region26: #{tpu_custom_call.1} parent=1 // pred_check
      _
    $region27: #{tpu_custom_call.1} parent=1 // pred_check_branch
      %68 = sbr.rel (0) target = $region29
    $region28: #{tpu_custom_call.1} parent=1 // pred_region
      %69 = dma.done [#allocation7], 1024
    $region29: #{tpu_custom_call.1} parent=1 // pred_fallthru
      _
    // Predicated region
    $region30: #{tpu_custom_call.1} parent=1 // pred_check
      _
    $region31: #{tpu_custom_call.1} parent=1 // pred_check_branch
      %71 = sbr.rel (0) target = $region33
    $region32: #{tpu_custom_call.1} parent=1 // pred_region
      %72 = dma.done [#allocation10], 256
    $region33: #{tpu_custom_call.1} parent=1 // pred_fallthru
      _
    %p73 = scmp.eq.s32.totalorder 0, 0
    // Predicated region
    $region34: #{tpu_custom_call.1} parent=1 // pred_check
      %p74 = pneg %p73
    $region35: #{tpu_custom_call.1} parent=1 // pred_check_branch
      %76 = sbr.rel (%p74) target = $region37
    $region36: #{tpu_custom_call.1} parent=1 // pred_region
      %77 = vst [vmem:[#allocation2] sm:$0xff] 0.0
      %78 = vst [vmem:[#allocation2 + $0x8] sm:$0xff] 0.0
    $region37: #{tpu_custom_call.1} parent=1 // pred_fallthru
      _
    %v79 = vld [vmem:[#allocation3] sm:$0xff]
    %v80 = vld [vmem:[#allocation3 + $0x8] sm:$0xff]
    %v81 = vld [vmem:[#allocation6] sm:$0xff]
    %v82 = vld [vmem:[#allocation6 + $0x8] sm:$0xff]
    %v83 = vld [vmem:[#allocation6 + $0x10] sm:$0xff]
    %v84 = vld [vmem:[#allocation6 + $0x18] sm:$0xff]
    %v85 = vld [vmem:[#allocation6 + $0x20] sm:$0xff]
    %v86 = vld [vmem:[#allocation6 + $0x28] sm:$0xff]
    %v87 = vld [vmem:[#allocation6 + $0x30] sm:$0xff]
    %v88 = vld [vmem:[#allocation6 + $0x38] sm:$0xff]
    %89 = vmatprep.subr.mxu0 0.0
    %90 = vmatpush1.xpose.msra.mxu0 0.0
    %91 = vmatprep.subr.mxu0 0.0
    %92 = vmatpush1.xpose.msra.mxu0 0.0
    %93 = vmatprep.subr.mxu0 0.0
    %94 = vmatpush1.xpose.msra.mxu0 0.0
    %95 = vmatprep.subr.mxu0 0.0
    %96 = vmatpush1.xpose.msra.mxu0 0.0
    %97 = vmatprep.subr.mxu0 0.0
    %98 = vmatpush1.xpose.msra.mxu0 0.0
    %99 = vmatprep.subr.mxu0 0.0
    %100 = vmatpush1.xpose.msra.mxu0 0.0
    %101 = vmatprep.subr.mxu0 0.0
    %102 = vmatpush1.xpose.msra.mxu0 0.0
    %103 = vmatprep.subr.mxu0 0.0
    %104 = vmatpush1.xpose.msra.mxu0 0.0
    %105 = vmatprep.subr.mxu0 0.0
    %106 = vmatpush1.xpose.msra.mxu0 %v88
    %107 = vmatprep.subr.mxu0 0.0
    %108 = vmatpush1.xpose.msra.mxu0 %v87
    %109 = vmatprep.subr.mxu0 0.0
    %110 = vmatpush1.xpose.msra.mxu0 %v86
    %111 = vmatprep.subr.mxu0 0.0
    %112 = vmatpush1.xpose.msra.mxu0 %v85
    %113 = vmatprep.subr.mxu0 0.0
    %114 = vmatpush1.xpose.msra.mxu0 %v84
    %115 = vmatprep.subr.mxu0 0.0
    %116 = vmatpush1.xpose.msra.mxu0 %v83
    %117 = vmatprep.subr.mxu0 0.0
    %118 = vmatpush1.xpose.msra.mxu0 %v82
    %119 = vmatprep.subr.mxu0 0.0
    %120 = vmatpush1.xpose.msra.mxu0 %v81
    %121 = vmatprep.subr.mxu0 0.0
    %122 = vmatpush2.xpose.msra.mxu0 0.0
    %123 = vmatprep.subr.mxu0 0.0
    %124 = vmatpush2.xpose.msra.mxu0 0.0
    %125 = vmatprep.subr.mxu0 0.0
    %126 = vmatpush2.xpose.msra.mxu0 0.0
    %127 = vmatprep.subr.mxu0 0.0
    %128 = vmatpush2.xpose.msra.mxu0 0.0
    %129 = vmatprep.subr.mxu0 0.0
    %130 = vmatpush2.xpose.msra.mxu0 0.0
    %131 = vmatprep.subr.mxu0 0.0
    %132 = vmatpush2.xpose.msra.mxu0 0.0
    %133 = vmatprep.subr.mxu0 0.0
    %134 = vmatpush2.xpose.msra.mxu0 0.0
    %135 = vmatprep.subr.mxu0 0.0
    %136 = vmatpush2.xpose.msra.mxu0 0.0
    %137 = vmatprep.subr.mxu0 0.0
    %138 = vmatpush2.xpose.msra.mxu0 0.0
    %139 = vmatprep.subr.mxu0 0.0
    %140 = vmatpush2.xpose.msra.mxu0 0.0
    %141 = vmatprep.subr.mxu0 0.0
    %142 = vmatpush2.xpose.msra.mxu0 0.0
    %143 = vmatprep.subr.mxu0 0.0
    %144 = vmatpush2.xpose.msra.mxu0 0.0
    %145 = vmatprep.subr.mxu0 0.0
    %146 = vmatpush2.xpose.msra.mxu0 0.0
    %147 = vmatprep.subr.mxu0 0.0
    %148 = vmatpush2.xpose.msra.mxu0 0.0
    %149 = vmatprep.subr.mxu0 0.0
    %150 = vmatpush2.xpose.msra.mxu0 0.0
    %151 = vmatprep.subr.mxu0 0.0
    %152 = vmatpush2.xpose.msra.mxu0 0.0
    %153 = vmatprep.mubr.f32.mxu0 0.0
    %154 = vmatmul.mubr.f32.gmra.mxu0 %v79
    %v155 = vpop.f32.mrf.mxu0
    %v156 = vadd.f32 0.0, %v155
    %v157 = vpop.f32.mrf.mxu0
    %158 = vmatprep.mubr.f32.mxu0 0.0
    %159 = vmatmul.mubr.f32.gmra.mxu0 %v80
    %v160 = vpop.f32.mrf.mxu0
    %v161 = vadd.f32 0.0, %v160
    %v162 = vpop.f32.mrf.mxu0
    %163 = vdwg.mxu0
    %v164 = vmul.f32 %v156, 1.442695
    %v165 = vpow.pop %v164
    %v166 = vmul.f32 %v161, 1.442695
    %v167 = vpow.pop %v166
    %v168 = vld [vmem:[#allocation2] sm:$0xff]
    %v169 = vld [vmem:[#allocation2 + $0x8] sm:$0xff]
    %v170 = vld [vmem:[#allocation8] sm:$0xff]
    %v171 = vld [vmem:[#allocation8 + $0x8] sm:$0xff]
    %v172 = vld [vmem:[#allocation8 + $0x10] sm:$0xff]
    %v173 = vld [vmem:[#allocation8 + $0x18] sm:$0xff]
    %v174 = vld [vmem:[#allocation8 + $0x20] sm:$0xff]
    %v175 = vld [vmem:[#allocation8 + $0x28] sm:$0xff]
    %v176 = vld [vmem:[#allocation8 + $0x30] sm:$0xff]
    %v177 = vld [vmem:[#allocation8 + $0x38] sm:$0xff]
    %vm178 = vcmask 523264
    %v180 = vsel %vm178, %v165, 0
    %v183 = vsel %vm178, %v167, 0
    %185 = vmatprep.subr.mxu0 0.0
    %186 = vmatpush1.msra.mxu0 0.0
    %187 = vmatprep.subr.mxu0 0.0
    %188 = vmatpush1.msra.mxu0 0.0
    %189 = vmatprep.subr.mxu0 0.0
    %190 = vmatpush1.msra.mxu0 0.0
    %191 = vmatprep.subr.mxu0 0.0
    %192 = vmatpush1.msra.mxu0 0.0
    %193 = vmatprep.subr.mxu0 0.0
    %194 = vmatpush1.msra.mxu0 0.0
    %195 = vmatprep.subr.mxu0 0.0
    %196 = vmatpush1.msra.mxu0 0.0
    %197 = vmatprep.subr.mxu0 0.0
    %198 = vmatpush1.msra.mxu0 0.0
    %199 = vmatprep.subr.mxu0 0.0
    %200 = vmatpush1.msra.mxu0 0.0
    %201 = vmatprep.subr.mxu0 0.0
    %202 = vmatpush1.msra.mxu0 %v177
    %203 = vmatprep.subr.mxu0 0.0
    %204 = vmatpush1.msra.mxu0 %v176
    %205 = vmatprep.subr.mxu0 0.0
    %206 = vmatpush1.msra.mxu0 %v175
    %207 = vmatprep.subr.mxu0 0.0
    %208 = vmatpush1.msra.mxu0 %v174
    %209 = vmatprep.subr.mxu0 0.0
    %210 = vmatpush1.msra.mxu0 %v173
    %211 = vmatprep.subr.mxu0 0.0
    %212 = vmatpush1.msra.mxu0 %v172
    %213 = vmatprep.subr.mxu0 0.0
    %214 = vmatpush1.msra.mxu0 %v171
    %215 = vmatprep.subr.mxu0 0.0
    %216 = vmatpush1.msra.mxu0 %v170
    %217 = vmatprep.subr.mxu0 0.0
    %218 = vmatpush2.msra.mxu0 0.0
    %219 = vmatprep.subr.mxu0 0.0
    %220 = vmatpush2.msra.mxu0 0.0
    %221 = vmatprep.subr.mxu0 0.0
    %222 = vmatpush2.msra.mxu0 0.0
    %223 = vmatprep.subr.mxu0 0.0
    %224 = vmatpush2.msra.mxu0 0.0
    %225 = vmatprep.subr.mxu0 0.0
    %226 = vmatpush2.msra.mxu0 0.0
    %227 = vmatprep.subr.mxu0 0.0
    %228 = vmatpush2.msra.mxu0 0.0
    %229 = vmatprep.subr.mxu0 0.0
    %230 = vmatpush2.msra.mxu0 0.0
    %231 = vmatprep.subr.mxu0 0.0
    %232 = vmatpush2.msra.mxu0 0.0
    %233 = vmatprep.subr.mxu0 0.0
    %234 = vmatpush2.msra.mxu0 0.0
    %235 = vmatprep.subr.mxu0 0.0
    %236 = vmatpush2.msra.mxu0 0.0
    %237 = vmatprep.subr.mxu0 0.0
    %238 = vmatpush2.msra.mxu0 0.0
    %239 = vmatprep.subr.mxu0 0.0
    %240 = vmatpush2.msra.mxu0 0.0
    %241 = vmatprep.subr.mxu0 0.0
    %242 = vmatpush2.msra.mxu0 0.0
    %243 = vmatprep.subr.mxu0 0.0
    %244 = vmatpush2.msra.mxu0 0.0
    %245 = vmatprep.subr.mxu0 0.0
    %246 = vmatpush2.msra.mxu0 0.0
    %247 = vmatprep.subr.mxu0 0.0
    %248 = vmatpush2.msra.mxu0 0.0
    %249 = vmatprep.mubr.f32.mxu0 0.0
    %250 = vmatmul.mubr.f32.gmra.mxu0 %v180
    %v251 = vpop.f32.mrf.mxu0
    %v252 = vadd.f32 0.0, %v251
    %v253 = vpop.f32.mrf.mxu0
    %254 = vmatprep.mubr.f32.mxu0 0.0
    %255 = vmatmul.mubr.f32.gmra.mxu0 %v183
    %v256 = vpop.f32.mrf.mxu0
    %v257 = vadd.f32 0.0, %v256
    %v258 = vpop.f32.mrf.mxu0
    %259 = vdwg.mxu0
    %v260 = vadd.f32 %v168, %v252
    %v261 = vadd.f32 %v169, %v257
    %262 = vst [vmem:[#allocation2] sm:$0xff] %v260
    %263 = vst [vmem:[#allocation2 + $0x8] sm:$0xff] %v261
    // Predicated region
    $region38: #{tpu_custom_call.1} parent=1 // pred_check
      %p264 = pneg %p73
    $region39: #{tpu_custom_call.1} parent=1 // pred_check_branch
      %266 = sbr.rel (%p264) target = $region41
    $region40: #{tpu_custom_call.1} parent=1 // pred_region
      %v267 = vld [vmem:[#allocation2] sm:$0xff]
      %v268 = vld [vmem:[#allocation2 + $0x8] sm:$0xff]
      %v269 = vld [vmem:[#allocation9] sm:$0xff]
      %v270 = vld [vmem:[#allocation9 + $0x8] sm:$0xff]
      %272 = vset.pattern.permute.xlu0 32
      %273 = vperm.xlu0 %272, %v267
      %v274 = vpop.permute.xlu0 %273
      %277 = vset.pattern.permute.xlu0 32
      %278 = vperm.xlu0 %277, %v268
      %v279 = vpop.permute.xlu0 %278
      %v281 = vmul.f32 %v269, %v274
      %v282 = vmul.f32 %v270, %v279
      %v283 = vsub.f32 %v281, %v267
      %v284 = vsub.f32 %v282, %v268
      %285 = vst [vmem:[#allocation11] sm:$0xff] %v283
      %286 = vst [vmem:[#allocation11 + $0x8] sm:$0xff] %v284
    $region41: #{tpu_custom_call.1} parent=1 // pred_fallthru
      _
    // Predicated region
    $region42: #{tpu_custom_call.1} parent=1 // pred_check
      _
    $region43: #{tpu_custom_call.1} parent=1 // pred_check_branch
      %288 = sbr.rel (0) target = $region45
    $region44: #{tpu_custom_call.1} parent=1 // pred_region
      %s290 = ssub.s32 256, 256
      %291 = vsyncadd [#allocation5], %s290
      %s292 = sshll.u32 [#allocation11], 4
      %s293 = int_to_ptr.vmem [resolvable:$true] %s292
      %298 = dma.vmem_to_hbm [thread:$0]  %s293, 256, %s4, [#allocation5], 128, 128, 8
    $region45: #{tpu_custom_call.1} parent=1 // pred_fallthru
      _
    // Predicated region
    $region46: #{tpu_custom_call.1} parent=1 // pred_check
      _
    $region47: #{tpu_custom_call.1} parent=1 // pred_check_branch
      %300 = sbr.rel (0) target = $region49
    $region48: #{tpu_custom_call.1} parent=1 // pred_region
      %301 = dma.done [#allocation5], 256
    $region49: #{tpu_custom_call.1} parent=1 // pred_fallthru
      _
    %302 = vsyncpa [#allocation4], 1
    %303 = vsyncpa [#allocation7], 1
    %304 = vsyncpa [#allocation10], 1
    %305 = vsyncpa [#allocation5], 1

</llo_original>
